<compile_context>
chip_gen: v6e
topology: v6e:2x2x1
jax: 0.10.0
libtpu: 0.0.40
codegen_flags: <defaults>
</compile_context>

<pallas_src>
import functools

import jax
import jax.numpy as jnp
from jax.experimental import pallas as pl
from jax.experimental.pallas import tpu as pltpu


# Contract lhs dim 1 with rhs dim 1 ("A @ B^T"), the canonical flash/splash-attention pattern.
_NT_DIM_NUMBERS = (((1,), (1,)), ((), ()))


def _quantum_circuit_kernel(x_ref, w_ref, b_ref, o_ref):
    # x_ref: (TILE_B, N) f32 -- module-native (batch, qubits) layout, read straight from HBM
    # w_ref: (3, N, N)   f32 -- torch nn.Linear layout (out_features, in_features)
    # b_ref: (3, N, 1)   f32
    # o_ref: (N, TILE_B) f32 -- lane-dense output (batch on lanes)
    state = None
    for l in range(3):  # 3 quantum layers, statically unrolled
        if l == 0:
            # First layer absorbs the (batch, qubits) -> (qubits, batch) layout change into the
            # MXU: contract x's qubit axis directly -> result already (N, TILE_B).
            z = jax.lax.dot_general(w_ref[0], x_ref[...], _NT_DIM_NUMBERS,
                                    preferred_element_type=jnp.float32)
        else:
            # (x @ W.T + b).T == W @ x.T + b[:, None]: torch weight layout used directly.
            z = jnp.dot(w_ref[l], state, preferred_element_type=jnp.float32)
        z = jax.nn.sigmoid(z + b_ref[l])
        # torch.roll(state, shifts=1, dims=1) on (B, N) == sublane roll by 1 in (N, B) layout (XLU).
        z = z + pltpu.roll(z, shift=1, axis=0)
        # L2-normalize each column (batch element); sigmoid > 0 so the norm is never 0 (no eps).
        state = z * jax.lax.rsqrt(jnp.sum(z * z, axis=0, keepdims=True))
    o_ref[...] = state


def _round_up(v: int, m: int) -> int:
    return ((v + m - 1) // m) * m


def _pick_tile_b(batch: int, max_tile_b: int) -> int:
    # Big batch tiles amortize the ~0.35us per-grid-step overhead (128-wide tiles are >10x
    # overhead-bound).  Once there is enough work, prefer >= 2 grid steps so the "parallel"
    # batch axis can be sharded across v7x's two TensorCores.
    if batch <= 1024:
        return _round_up(max(batch, 1), 128)          # single tile; grid collapses to length 1
    return min(max_tile_b, _round_up(pl.cdiv(batch, 2), 128))


@functools.partial(jax.jit, static_argnames=("tile_b", "max_tile_b"))
def quantum_circuit_forward(x, weights, biases, *, tile_b=None, max_tile_b=8192):
    """QuantumCircuit forward.

    x: (B, N) f32; weights: 3 x (N, N) in torch nn.Linear (out_features, in_features) layout;
    biases: 3 x (N,) or (1, N).  Returns (B, N).
    """
    B, N = x.shape
    w_packed = jnp.stack([jnp.asarray(w, jnp.float32) for w in weights])                # (3, N, N)
    b_packed = jnp.stack([jnp.asarray(b, jnp.float32).reshape(N, 1) for b in biases])   # (3, N, 1)

    if tile_b is None:
        tile_b = _pick_tile_b(B, max_tile_b)
    tile_b = _round_up(tile_b, 128)
    bp = _round_up(B, tile_b)
    # Zero-pad the batch to a tile multiple; padded rows stay in their own columns and are
    # sliced off below (see invariant at the top of the file).
    x_p = x if bp == B else jnp.pad(x, ((0, bp - B), (0, 0)))

    out_t = pl.pallas_call(
        _quantum_circuit_kernel,
        out_shape=jax.ShapeDtypeStruct((N, bp), jnp.float32),
        grid=(bp // tile_b,),
        in_specs=[
            pl.BlockSpec((tile_b, N), lambda i: (i, 0)),    # batch tile, module-native layout
            pl.BlockSpec((3, N, N), lambda i: (0, 0, 0)),   # VMEM-resident packed weights
            pl.BlockSpec((3, N, 1), lambda i: (0, 0, 0)),   # VMEM-resident packed biases
        ],
        # Lane-dense output block (batch on the 128-lane axis) -> unmasked vector stores.
        out_specs=pl.BlockSpec((N, tile_b), lambda i: (0, i)),
        compiler_params=pltpu.CompilerParams(
            dimension_semantics=("parallel",),              # batch tiles across TCs (v7x megacore)
            vmem_limit_bytes=32 * 1024 * 1024,              # ~512*tile_b bytes/tile double-buffered
        ),
    )(x_p, w_packed, b_packed)
    # Single remaining wrapper transpose (output side only); kept so the kernel's stores stay
    # lane-dense rather than 32-lane masked vst.msk (per review, especially important on v5e).
    return out_t[:, :B].T


def reference_forward(x, weights, biases):
    state = x
    for w, b in zip(weights, biases):
        y = jax.nn.sigmoid(
            jnp.dot(state, w.T, precision=jax.lax.Precision.HIGHEST)
            + jnp.asarray(b).reshape(1, -1))
        y = y + jnp.roll(y, shift=1, axis=1)
        state = y / jnp.linalg.norm(y, axis=1, keepdims=True)
    return state


if __name__ == "__main__":
    n_qubits = 32

    key = jax.random.PRNGKey(0)
    k_x1, k_x2, *k_params = jax.random.split(key, 2 + 6)

    # Deterministic parameter init (uniform, torch.nn.Linear-style bound).
    bound = 1.0 / (n_qubits ** 0.5)
    weights, biases = [], []
    for i in range(3):
        w = jax.random.uniform(k_params[2 * i], (n_qubits, n_qubits),
                               minval=-bound, maxval=bound, dtype=jnp.float32)
        b = jax.random.uniform(k_params[2 * i + 1], (1, n_qubits),
                               minval=-bound, maxval=bound, dtype=jnp.float32)
        weights.append(w)
        biases.append(b)

    # Tolerance covers MXU multi-pass f32 vs XLA HIGHEST-precision pass-count differences.
    tol = dict(atol=1e-4, rtol=1e-4)

    # Case 1: small non-128-multiple batch -> single padded tile (grid of length 1).
    x1 = jax.random.normal(k_x1, (200, n_qubits), dtype=jnp.float32)
    out1 = jax.block_until_ready(quantum_circuit_forward(x1, weights, biases))
    ref1 = reference_forward(x1, weights, biases)
    assert out1.shape == x1.shape
    assert jnp.allclose(out1, ref1, **tol), float(jnp.max(jnp.abs(out1 - ref1)))

    # Case 2: forced small tile -> 4 batch tiles; exercises the pipelined grid and the
    # "parallel" (megacore) path.
    x2 = jax.random.normal(k_x2, (512, n_qubits), dtype=jnp.float32)
    out2 = jax.block_until_ready(quantum_circuit_forward(x2, weights, biases, tile_b=128))
    ref2 = reference_forward(x2, weights, biases)
    assert out2.shape == x2.shape
    assert jnp.allclose(out2, ref2, **tol), float(jnp.max(jnp.abs(out2 - ref2)))

    print("KERNEL_OK")
</pallas_src>

<mosaic_0001>
module attributes {stable_mosaic.version = 11 : i64} {
  func.func @_quantum_circuit_kernel(%arg0: i32, %arg1: memref<256x32xf32, #tpu.memory_space<vmem>>, %arg2: memref<3x32x32xf32, #tpu.memory_space<vmem>>, %arg3: memref<3x32x1xf32, #tpu.memory_space<vmem>>, %arg4: memref<32x256xf32, #tpu.memory_space<vmem>>) attributes {dimension_semantics = [#tpu.dimension_semantics<parallel>], iteration_bounds = array<i64: 1>, scalar_prefetch = 0 : i64, scratch_operands = 0 : i64, tpu.core_type = #tpu.core_type<tc>, window_params = [{transform_indices = @transform_0, window_bounds = array<i64: 256, 32>}, {pipeline_mode = #tpu.pipeline_mode<synchronous>, transform_indices = @transform_1, window_bounds = array<i64: 3, 32, 32>}, {pipeline_mode = #tpu.pipeline_mode<synchronous>, transform_indices = @transform_2, window_bounds = array<i64: 3, 32, 1>}, {transform_indices = @transform_3, window_bounds = array<i64: 32, 256>}]} {
    %c0 = arith.constant 0 : index
    %c0_0 = arith.constant 0 : index
    %c0_1 = arith.constant 0 : index
    %0 = vector.load %arg2[%c0, %c0_0, %c0_1] : memref<3x32x32xf32, #tpu.memory_space<vmem>>, vector<1x32x32xf32>
    %1 = vector.shape_cast %0 : vector<1x32x32xf32> to vector<32x32xf32>
    %c0_2 = arith.constant 0 : index
    %c0_3 = arith.constant 0 : index
    %2 = vector.load %arg1[%c0_2, %c0_3] : memref<256x32xf32, #tpu.memory_space<vmem>>, vector<256x32xf32>
    %cst = arith.constant dense<0.000000e+00> : vector<32x256xf32>
    %3 = tpu.matmul %1, %2, %cst {dimension_numbers = #tpu.dot_dimension_numbers<[1], [1], [0], [0], [0, 0, 1, 0], [], []>} : vector<32x32xf32>, vector<256x32xf32>, vector<32x256xf32> -> vector<32x256xf32>
    %c0_4 = arith.constant 0 : index
    %c0_5 = arith.constant 0 : index
    %c0_6 = arith.constant 0 : index
    %4 = vector.load %arg3[%c0_4, %c0_5, %c0_6] : memref<3x32x1xf32, #tpu.memory_space<vmem>>, vector<1x32x1xf32>
    %5 = vector.shape_cast %4 : vector<1x32x1xf32> to vector<32x1xf32>
    %6 = vector.broadcast %5 : vector<32x1xf32> to vector<32x256xf32>
    %7 = arith.addf %3, %6 : vector<32x256xf32>
    %8 = arith.negf %7 : vector<32x256xf32>
    %9 = math.exp %8 : vector<32x256xf32>
    %cst_7 = arith.constant 1.000000e+00 : f32
    %10 = vector.broadcast %cst_7 : f32 to vector<32x256xf32>
    %11 = arith.addf %10, %9 : vector<32x256xf32>
    %12 = arith.divf %10, %11 : vector<32x256xf32>
    %c1_i32 = arith.constant 1 : i32
    %13 = tpu.dynamic_rotate %12 by %c1_i32 dim 0 : vector<32x256xf32>, i32 -> vector<32x256xf32>
    %14 = arith.addf %12, %13 : vector<32x256xf32>
    %15 = arith.mulf %14, %14 : vector<32x256xf32>
    %cst_8 = arith.constant dense<0.000000e+00> : vector<256xf32>
    %16 = vector.multi_reduction <add>, %15, %cst_8 [0] : vector<32x256xf32> to vector<256xf32>
    %17 = vector.shape_cast %16 : vector<256xf32> to vector<1x256xf32>
    %18 = math.rsqrt %17 : vector<1x256xf32>
    %19 = vector.broadcast %18 : vector<1x256xf32> to vector<32x256xf32>
    %20 = arith.mulf %14, %19 : vector<32x256xf32>
    %c1 = arith.constant 1 : index
    %c0_9 = arith.constant 0 : index
    %c0_10 = arith.constant 0 : index
    %21 = vector.load %arg2[%c1, %c0_9, %c0_10] : memref<3x32x32xf32, #tpu.memory_space<vmem>>, vector<1x32x32xf32>
    %22 = vector.shape_cast %21 : vector<1x32x32xf32> to vector<32x32xf32>
    %cst_11 = arith.constant dense<0.000000e+00> : vector<32x256xf32>
    %23 = tpu.matmul %22, %20, %cst_11 {dimension_numbers = #tpu.dot_dimension_numbers<[1], [0], [0], [1], [0, 0, 1, 1], [], []>} : vector<32x32xf32>, vector<32x256xf32>, vector<32x256xf32> -> vector<32x256xf32>
    %c1_12 = arith.constant 1 : index
    %c0_13 = arith.constant 0 : index
    %c0_14 = arith.constant 0 : index
    %24 = vector.load %arg3[%c1_12, %c0_13, %c0_14] : memref<3x32x1xf32, #tpu.memory_space<vmem>>, vector<1x32x1xf32>
    %25 = vector.shape_cast %24 : vector<1x32x1xf32> to vector<32x1xf32>
    %26 = vector.broadcast %25 : vector<32x1xf32> to vector<32x256xf32>
    %27 = arith.addf %23, %26 : vector<32x256xf32>
    %28 = arith.negf %27 : vector<32x256xf32>
    %29 = math.exp %28 : vector<32x256xf32>
    %cst_15 = arith.constant 1.000000e+00 : f32
    %30 = vector.broadcast %cst_15 : f32 to vector<32x256xf32>
    %31 = arith.addf %30, %29 : vector<32x256xf32>
    %32 = arith.divf %30, %31 : vector<32x256xf32>
    %c1_i32_16 = arith.constant 1 : i32
    %33 = tpu.dynamic_rotate %32 by %c1_i32_16 dim 0 : vector<32x256xf32>, i32 -> vector<32x256xf32>
    %34 = arith.addf %32, %33 : vector<32x256xf32>
    %35 = arith.mulf %34, %34 : vector<32x256xf32>
    %cst_17 = arith.constant dense<0.000000e+00> : vector<256xf32>
    %36 = vector.multi_reduction <add>, %35, %cst_17 [0] : vector<32x256xf32> to vector<256xf32>
    %37 = vector.shape_cast %36 : vector<256xf32> to vector<1x256xf32>
    %38 = math.rsqrt %37 : vector<1x256xf32>
    %39 = vector.broadcast %38 : vector<1x256xf32> to vector<32x256xf32>
    %40 = arith.mulf %34, %39 : vector<32x256xf32>
    %c2 = arith.constant 2 : index
    %c0_18 = arith.constant 0 : index
    %c0_19 = arith.constant 0 : index
    %41 = vector.load %arg2[%c2, %c0_18, %c0_19] : memref<3x32x32xf32, #tpu.memory_space<vmem>>, vector<1x32x32xf32>
    %42 = vector.shape_cast %41 : vector<1x32x32xf32> to vector<32x32xf32>
    %cst_20 = arith.constant dense<0.000000e+00> : vector<32x256xf32>
    %43 = tpu.matmul %42, %40, %cst_20 {dimension_numbers = #tpu.dot_dimension_numbers<[1], [0], [0], [1], [0, 0, 1, 1], [], []>} : vector<32x32xf32>, vector<32x256xf32>, vector<32x256xf32> -> vector<32x256xf32>
    %c2_21 = arith.constant 2 : index
    %c0_22 = arith.constant 0 : index
    %c0_23 = arith.constant 0 : index
    %44 = vector.load %arg3[%c2_21, %c0_22, %c0_23] : memref<3x32x1xf32, #tpu.memory_space<vmem>>, vector<1x32x1xf32>
    %45 = vector.shape_cast %44 : vector<1x32x1xf32> to vector<32x1xf32>
    %46 = vector.broadcast %45 : vector<32x1xf32> to vector<32x256xf32>
    %47 = arith.addf %43, %46 : vector<32x256xf32>
    %48 = arith.negf %47 : vector<32x256xf32>
    %49 = math.exp %48 : vector<32x256xf32>
    %cst_24 = arith.constant 1.000000e+00 : f32
    %50 = vector.broadcast %cst_24 : f32 to vector<32x256xf32>
    %51 = arith.addf %50, %49 : vector<32x256xf32>
    %52 = arith.divf %50, %51 : vector<32x256xf32>
    %c1_i32_25 = arith.constant 1 : i32
    %53 = tpu.dynamic_rotate %52 by %c1_i32_25 dim 0 : vector<32x256xf32>, i32 -> vector<32x256xf32>
    %54 = arith.addf %52, %53 : vector<32x256xf32>
    %55 = arith.mulf %54, %54 : vector<32x256xf32>
    %cst_26 = arith.constant dense<0.000000e+00> : vector<256xf32>
    %56 = vector.multi_reduction <add>, %55, %cst_26 [0] : vector<32x256xf32> to vector<256xf32>
    %57 = vector.shape_cast %56 : vector<256xf32> to vector<1x256xf32>
    %58 = math.rsqrt %57 : vector<1x256xf32>
    %59 = vector.broadcast %58 : vector<1x256xf32> to vector<32x256xf32>
    %60 = arith.mulf %54, %59 : vector<32x256xf32>
    %c0_27 = arith.constant 0 : index
    %c0_28 = arith.constant 0 : index
    %61 = vector.load %arg4[%c0_27, %c0_28] : memref<32x256xf32, #tpu.memory_space<vmem>>, vector<32x256xf32>
    tpu.vector_store %arg4[%c0_27, %c0_28], %60 {strides = array<i32>} : memref<32x256xf32, #tpu.memory_space<vmem>>, vector<32x256xf32>,
    return
  }
  func.func @transform_0(%arg0: i32) -> (i32, i32) {
    %c0_i32 = arith.constant 0 : i32
    %c0_i32_0 = arith.constant 0 : i32
    return %arg0, %c0_i32 : i32, i32
  }
  func.func @transform_1(%arg0: i32) -> (i32, i32, i32) {
    %c0_i32 = arith.constant 0 : i32
    %c0_i32_0 = arith.constant 0 : i32
    %c0_i32_1 = arith.constant 0 : i32
    %c0_i32_2 = arith.constant 0 : i32
    return %c0_i32, %c0_i32_0, %c0_i32_1 : i32, i32, i32
  }
  func.func @transform_2(%arg0: i32) -> (i32, i32, i32) {
    %c0_i32 = arith.constant 0 : i32
    %c0_i32_0 = arith.constant 0 : i32
    %c0_i32_1 = arith.constant 0 : i32
    %c0_i32_2 = arith.constant 0 : i32
    return %c0_i32, %c0_i32_0, %c0_i32_1 : i32, i32, i32
  }
  func.func @transform_3(%arg0: i32) -> (i32, i32) {
    %c0_i32 = arith.constant 0 : i32
    %c0_i32_0 = arith.constant 0 : i32
    return %c0_i32, %arg0 : i32, i32
  }
}

</mosaic_0001>

<llo_original>
// kernel: quantum_circuit_forward.1
$region0: #{quantum_circuit_forward.1}
  #allocation0 [shape = 'u32[]', space=smem, size = 0x4, offset = 0x4, fixed_abs, tag = 'smem constant byte address 0x4 - core index']
  #allocation1 [shape = 'u32[144,128]{1,0:T(1,128)}', space=vmem, size = 0x12000, scoped, tag = 'internal scratch']
  %s0 = inlined_call_operand.vmem [shape: f32[256,32], index: 0, kind: input, shape index: {}]
  %s1 = inlined_call_operand.vmem [shape: f32[3,32,32], index: 1, kind: input, shape index: {}]
  %s2 = inlined_call_operand.vmem [shape: f32[3,32,1], index: 2, kind: input, shape index: {}]
  %s3 = inlined_call_operand.vmem [shape: f32[32,256], index: 3, kind: output, shape index: {}]
  %s4 = sld [smem:[#allocation0]]
  $region22: #{quantum_circuit_forward.1} parent=0
    _
  %s6 = ssub.s32 1, %s4
  %s7 = scalar_select 0, %s6, %s4
  // Predicated region
  $region2: #{quantum_circuit_forward.1} parent=0 // pred_check
    _
  $region3: #{quantum_circuit_forward.1} parent=0 // pred_check_branch
    %9 = sbr.rel (0) target = $region5
  $region4: #{quantum_circuit_forward.1} parent=0 // pred_region
    _
  $region5: #{quantum_circuit_forward.1} parent=0 // pred_fallthru
    _
  // Predicated region
  $region6: #{quantum_circuit_forward.1} parent=0 // pred_check
    _
  $region7: #{quantum_circuit_forward.1} parent=0 // pred_check_branch
    %11 = sbr.rel (0) target = $region9
  $region8: #{quantum_circuit_forward.1} parent=0 // pred_region
    _
  $region9: #{quantum_circuit_forward.1} parent=0 // pred_fallthru
    _
  // Predicated region
  $region10: #{quantum_circuit_forward.1} parent=0 // pred_check
    _
  $region11: #{quantum_circuit_forward.1} parent=0 // pred_check_branch
    %13 = sbr.rel (0) target = $region13
  $region12: #{quantum_circuit_forward.1} parent=0 // pred_region
    _
  $region13: #{quantum_circuit_forward.1} parent=0 // pred_fallthru
    _
  %v14 = vld [vmem:[%s1] sm:$0xff]
  %v15 = vld [vmem:[%s1 + $0x8] sm:$0xff]
  %v16 = vld [vmem:[%s1 + $0x10] sm:$0xff]
  %v17 = vld [vmem:[%s1 + $0x18] sm:$0xff]
  %v18 = vld [vmem:[%s0] sm:$0xff]
  %v19 = vld [vmem:[%s0 + $0x8] sm:$0xff]
  %v20 = vld [vmem:[%s0 + $0x10] sm:$0xff]
  %v21 = vld [vmem:[%s0 + $0x18] sm:$0xff]
  %v22 = vld [vmem:[%s0 + $0x20] sm:$0xff]
  %v23 = vld [vmem:[%s0 + $0x28] sm:$0xff]
  %v24 = vld [vmem:[%s0 + $0x30] sm:$0xff]
  %v25 = vld [vmem:[%s0 + $0x38] sm:$0xff]
  %v26 = vld [vmem:[%s0 + $0x40] sm:$0xff]
  %v27 = vld [vmem:[%s0 + $0x48] sm:$0xff]
  %v28 = vld [vmem:[%s0 + $0x50] sm:$0xff]
  %v29 = vld [vmem:[%s0 + $0x58] sm:$0xff]
  %v30 = vld [vmem:[%s0 + $0x60] sm:$0xff]
  %v31 = vld [vmem:[%s0 + $0x68] sm:$0xff]
  %v32 = vld [vmem:[%s0 + $0x70] sm:$0xff]
  %v33 = vld [vmem:[%s0 + $0x78] sm:$0xff]
  %v34 = vld [vmem:[%s0 + $0x80] sm:$0xff]
  %v35 = vld [vmem:[%s0 + $0x88] sm:$0xff]
  %v36 = vld [vmem:[%s0 + $0x90] sm:$0xff]
  %v37 = vld [vmem:[%s0 + $0x98] sm:$0xff]
  %v38 = vld [vmem:[%s0 + $0xa0] sm:$0xff]
  %v39 = vld [vmem:[%s0 + $0xa8] sm:$0xff]
  %v40 = vld [vmem:[%s0 + $0xb0] sm:$0xff]
  %v41 = vld [vmem:[%s0 + $0xb8] sm:$0xff]
  %v42 = vld [vmem:[%s0 + $0xc0] sm:$0xff]
  %v43 = vld [vmem:[%s0 + $0xc8] sm:$0xff]
  %v44 = vld [vmem:[%s0 + $0xd0] sm:$0xff]
  %v45 = vld [vmem:[%s0 + $0xd8] sm:$0xff]
  %v46 = vld [vmem:[%s0 + $0xe0] sm:$0xff]
  %v47 = vld [vmem:[%s0 + $0xe8] sm:$0xff]
  %v48 = vld [vmem:[%s0 + $0xf0] sm:$0xff]
  %v49 = vld [vmem:[%s0 + $0xf8] sm:$0xff]
  %v50 = vld [vmem:[%s2] sm:$0xff]
  %v51 = vld [vmem:[%s2 + $0x8] sm:$0xff]
  %v52 = vld [vmem:[%s2 + $0x10] sm:$0xff]
  %v53 = vld [vmem:[%s2 + $0x18] sm:$0xff]
  %55 = vset.pattern.permute.xlu0 0
  %56 = vperm.xlu0 %55, %v50
  %v57 = vpop.permute.xlu0 %56
  %60 = vset.pattern.permute.xlu0 0
  %61 = vperm.xlu0 %60, %v51
  %v62 = vpop.permute.xlu0 %61
  %65 = vset.pattern.permute.xlu0 0
  %66 = vperm.xlu0 %65, %v52
  %v67 = vpop.permute.xlu0 %66
  %70 = vset.pattern.permute.xlu0 0
  %71 = vperm.xlu0 %70, %v53
  %v72 = vpop.permute.xlu0 %71
  %vm74 = vcmask 261120
  %v76 = vsel %vm74, %v14, 0
  %v79 = vsel %vm74, %v15, 0
  %v82 = vsel %vm74, %v16, 0
  %v85 = vsel %vm74, %v17, 0
  %v88 = vsel %vm74, %v18, 0
  %v91 = vsel %vm74, %v19, 0
  %v94 = vsel %vm74, %v20, 0
  %v97 = vsel %vm74, %v21, 0
  %v100 = vsel %vm74, %v22, 0
  %v103 = vsel %vm74, %v23, 0
  %v106 = vsel %vm74, %v24, 0
  %v109 = vsel %vm74, %v25, 0
  %v112 = vsel %vm74, %v26, 0
  %v115 = vsel %vm74, %v27, 0
  %v118 = vsel %vm74, %v28, 0
  %v121 = vsel %vm74, %v29, 0
  %v124 = vsel %vm74, %v30, 0
  %v127 = vsel %vm74, %v31, 0
  %v130 = vsel %vm74, %v32, 0
  %v133 = vsel %vm74, %v33, 0
  %v136 = vsel %vm74, %v34, 0
  %v139 = vsel %vm74, %v35, 0
  %v142 = vsel %vm74, %v36, 0
  %v145 = vsel %vm74, %v37, 0
  %v148 = vsel %vm74, %v38, 0
  %v151 = vsel %vm74, %v39, 0
  %v154 = vsel %vm74, %v40, 0
  %v157 = vsel %vm74, %v41, 0
  %v160 = vsel %vm74, %v42, 0
  %v163 = vsel %vm74, %v43, 0
  %v166 = vsel %vm74, %v44, 0
  %v169 = vsel %vm74, %v45, 0
  %v172 = vsel %vm74, %v46, 0
  %v175 = vsel %vm74, %v47, 0
  %v178 = vsel %vm74, %v48, 0
  %v181 = vsel %vm74, %v49, 0
  %183 = vmatprep.subr.mxu0 0.0
  %184 = vmatpush1.xpose.msra.mxu0 %v133
  %185 = vmatprep.subr.mxu0 0.0
  %186 = vmatpush1.xpose.msra.mxu0 %v130
  %187 = vmatprep.subr.mxu0 0.0
  %188 = vmatpush1.xpose.msra.mxu0 %v127
  %189 = vmatprep.subr.mxu0 0.0
  %190 = vmatpush1.xpose.msra.mxu0 %v124
  %191 = vmatprep.subr.mxu0 0.0
  %192 = vmatpush1.xpose.msra.mxu0 %v121
  %193 = vmatprep.subr.mxu0 0.0
  %194 = vmatpush1.xpose.msra.mxu0 %v118
  %195 = vmatprep.subr.mxu0 0.0
  %196 = vmatpush1.xpose.msra.mxu0 %v115
  %197 = vmatprep.subr.mxu0 0.0
  %198 = vmatpush1.xpose.msra.mxu0 %v112
  %199 = vmatprep.subr.mxu0 0.0
  %200 = vmatpush1.xpose.msra.mxu0 %v109
  %201 = vmatprep.subr.mxu0 0.0
  %202 = vmatpush1.xpose.msra.mxu0 %v106
  %203 = vmatprep.subr.mxu0 0.0
  %204 = vmatpush1.xpose.msra.mxu0 %v103
  %205 = vmatprep.subr.mxu0 0.0
  %206 = vmatpush1.xpose.msra.mxu0 %v100
  %207 = vmatprep.subr.mxu0 0.0
  %208 = vmatpush1.xpose.msra.mxu0 %v97
  %209 = vmatprep.subr.mxu0 0.0
  %210 = vmatpush1.xpose.msra.mxu0 %v94
  %211 = vmatprep.subr.mxu0 0.0
  %212 = vmatpush1.xpose.msra.mxu0 %v91
  %213 = vmatprep.subr.mxu0 0.0
  %214 = vmatpush1.xpose.msra.mxu0 %v88
  %215 = vmatprep.subr.mxu0 0.0
  %216 = vmatpush2.xpose.msra.mxu0 %v181
  %217 = vmatprep.subr.mxu0 0.0
  %218 = vmatpush2.xpose.msra.mxu0 %v178
  %219 = vmatprep.subr.mxu0 0.0
  %220 = vmatpush2.xpose.msra.mxu0 %v175
  %221 = vmatprep.subr.mxu0 0.0
  %222 = vmatpush2.xpose.msra.mxu0 %v172
  %223 = vmatprep.subr.mxu0 0.0
  %224 = vmatpush2.xpose.msra.mxu0 %v169
  %225 = vmatprep.subr.mxu0 0.0
  %226 = vmatpush2.xpose.msra.mxu0 %v166
  %227 = vmatprep.subr.mxu0 0.0
  %228 = vmatpush2.xpose.msra.mxu0 %v163
  %229 = vmatprep.subr.mxu0 0.0
  %230 = vmatpush2.xpose.msra.mxu0 %v160
  %231 = vmatprep.subr.mxu0 0.0
  %232 = vmatpush2.xpose.msra.mxu0 %v157
  %233 = vmatprep.subr.mxu0 0.0
  %234 = vmatpush2.xpose.msra.mxu0 %v154
  %235 = vmatprep.subr.mxu0 0.0
  %236 = vmatpush2.xpose.msra.mxu0 %v151
  %237 = vmatprep.subr.mxu0 0.0
  %238 = vmatpush2.xpose.msra.mxu0 %v148
  %239 = vmatprep.subr.mxu0 0.0
  %240 = vmatpush2.xpose.msra.mxu0 %v145
  %241 = vmatprep.subr.mxu0 0.0
  %242 = vmatpush2.xpose.msra.mxu0 %v142
  %243 = vmatprep.subr.mxu0 0.0
  %244 = vmatpush2.xpose.msra.mxu0 %v139
  %245 = vmatprep.subr.mxu0 0.0
  %246 = vmatpush2.xpose.msra.mxu0 %v136
  %247 = vmatprep.mubr.f32.mxu0 0.0
  %248 = vmatmul.mubr.f32.gmra.mxu0 %v76
  %v249 = vpop.f32.mrf.mxu0
  %v250 = vadd.f32 %v57, %v249
  %v251 = vpop.f32.mrf.mxu0
  %v252 = vadd.f32 %v57, %v251
  %253 = vmatprep.mubr.f32.mxu0 0.0
  %254 = vmatmul.mubr.f32.gmra.mxu0 %v79
  %v255 = vpop.f32.mrf.mxu0
  %v256 = vadd.f32 %v62, %v255
  %v257 = vpop.f32.mrf.mxu0
  %v258 = vadd.f32 %v62, %v257
  %259 = vmatprep.mubr.f32.mxu0 0.0
  %260 = vmatmul.mubr.f32.gmra.mxu0 %v82
  %v261 = vpop.f32.mrf.mxu0
  %v262 = vadd.f32 %v67, %v261
  %v263 = vpop.f32.mrf.mxu0
  %v264 = vadd.f32 %v67, %v263
  %265 = vmatprep.mubr.f32.mxu0 0.0
  %266 = vmatmul.mubr.f32.gmra.mxu0 %v85
  %v267 = vpop.f32.mrf.mxu0
  %v268 = vadd.f32 %v72, %v267
  %v269 = vpop.f32.mrf.mxu0
  %v270 = vadd.f32 %v72, %v269
  %271 = vdwg.mxu0
  %v272 = vxor.u32 %v250, 2147483648
  %v273 = vxor.u32 %v252, 2147483648
  %v274 = vxor.u32 %v256, 2147483648
  %v275 = vxor.u32 %v258, 2147483648
  %v276 = vxor.u32 %v262, 2147483648
  %v277 = vxor.u32 %v264, 2147483648
  %v278 = vxor.u32 %v268, 2147483648
  %v279 = vxor.u32 %v270, 2147483648
  %v280 = vmul.f32 %v272, 1.442695
  %v281 = vpow.pop %v280
  %v282 = vmul.f32 %v273, 1.442695
  %v283 = vpow.pop %v282
  %v284 = vmul.f32 %v274, 1.442695
  %v285 = vpow.pop %v284
  %v286 = vmul.f32 %v275, 1.442695
  %v287 = vpow.pop %v286
  %v288 = vmul.f32 %v276, 1.442695
  %v289 = vpow.pop %v288
  %v290 = vmul.f32 %v277, 1.442695
  %v291 = vpow.pop %v290
  %v292 = vmul.f32 %v278, 1.442695
  %v293 = vpow.pop %v292
  %v294 = vmul.f32 %v279, 1.442695
  %v295 = vpow.pop %v294
  %v296 = vadd.f32 %v281, 1.0
  %v297 = vadd.f32 %v283, 1.0
  %v298 = vadd.f32 %v285, 1.0
  %v299 = vadd.f32 %v287, 1.0
  %v300 = vadd.f32 %v289, 1.0
  %v301 = vadd.f32 %v291, 1.0
  %v302 = vadd.f32 %v293, 1.0
  %v303 = vadd.f32 %v295, 1.0
  %v304 = vrcp.pop %v296
  %v305 = vmul.f32 1.0, %v304
  %v306 = vrcp.pop %v297
  %v307 = vmul.f32 1.0, %v306
  %v308 = vrcp.pop %v298
  %v309 = vmul.f32 1.0, %v308
  %v310 = vrcp.pop %v299
  %v311 = vmul.f32 1.0, %v310
  %v312 = vrcp.pop %v300
  %v313 = vmul.f32 1.0, %v312
  %v314 = vrcp.pop %v301
  %v315 = vmul.f32 1.0, %v314
  %v316 = vrcp.pop %v302
  %v317 = vmul.f32 1.0, %v316
  %v318 = vrcp.pop %v303
  %v319 = vmul.f32 1.0, %v318
  %v320 = vrot.slane %v305, 7
  %v321 = vrot.slane %v307, 7
  %v322 = vrot.slane %v309, 7
  %v323 = vrot.slane %v311, 7
  %v324 = vrot.slane %v313, 7
  %v325 = vrot.slane %v315, 7
  %v326 = vrot.slane %v317, 7
  %v327 = vrot.slane %v319, 7
  %v328 = vlaneseq
  %v329 = vshrl.u32 %v328, 7
  %vm330 = vcmp.lt.s32.totalorder %v329, 1
  %v331 = vsel %vm330, %v324, %v326
  %v332 = vsel %vm330, %v325, %v327
  %v333 = vsel %vm330, %v322, %v324
  %v334 = vsel %vm330, %v323, %v325
  %v335 = vsel %vm330, %v320, %v322
  %v336 = vsel %vm330, %v321, %v323
  %v337 = vsel %vm330, %v326, %v320
  %v338 = vsel %vm330, %v327, %v321
  %v339 = vadd.f32 %v305, %v337
  %v340 = vadd.f32 %v307, %v338
  %v341 = vadd.f32 %v309, %v335
  %v342 = vadd.f32 %v311, %v336
  %v343 = vadd.f32 %v313, %v333
  %v344 = vadd.f32 %v315, %v334
  %v345 = vadd.f32 %v317, %v331
  %v346 = vadd.f32 %v319, %v332
  %v347 = vmul.f32 %v339, %v339
  %v348 = vmul.f32 %v340, %v340
  %v349 = vmul.f32 %v341, %v341
  %v350 = vmul.f32 %v342, %v342
  %v351 = vmul.f32 %v343, %v343
  %v352 = vmul.f32 %v344, %v344
  %v353 = vmul.f32 %v345, %v345
  %v354 = vmul.f32 %v346, %v346
  %v355 = vadd.f32 %v347, %v349
  %v356 = vadd.f32 %v355, %v351
  %v357 = vadd.f32 %v356, %v353
  %v358 = vrot.slane %v357, 4
  %v359 = vadd.f32 %v357, %v358
  %v360 = vrot.slane %v359, 2
  %v361 = vadd.f32 %v359, %v360
  %v362 = vrot.slane %v361, 1
  %v363 = vadd.f32 %v361, %v362
  %v364 = vadd.f32 %v348, %v350
  %v365 = vadd.f32 %v364, %v352
  %v366 = vadd.f32 %v365, %v354
  %v367 = vrot.slane %v366, 4
  %v368 = vadd.f32 %v366, %v367
  %v369 = vrot.slane %v368, 2
  %v370 = vadd.f32 %v368, %v369
  %v371 = vrot.slane %v370, 1
  %v372 = vadd.f32 %v370, %v371
  %v373 = vrsqrt.pop %v363
  %v374 = vrsqrt.pop %v372
  %v375 = vmul.f32 %v339, %v373
  %v376 = vmul.f32 %v340, %v374
  %v377 = vmul.f32 %v341, %v373
  %v378 = vmul.f32 %v342, %v374
  %v379 = vmul.f32 %v343, %v373
  %v380 = vmul.f32 %v344, %v374
  %v381 = vmul.f32 %v345, %v373
  %v382 = vmul.f32 %v346, %v374
  %s383 = scalar_lea.vmem %s1, 32
  %v384 = vld [vmem:[%s383] sm:$0xff]
  %v385 = vld [vmem:[%s383 + $0x8] sm:$0xff]
  %v386 = vld [vmem:[%s383 + $0x10] sm:$0xff]
  %v387 = vld [vmem:[%s383 + $0x18] sm:$0xff]
  %s388 = scalar_lea.vmem %s2, 32
  %v389 = vld [vmem:[%s388] sm:$0xff]
  %v390 = vld [vmem:[%s388 + $0x8] sm:$0xff]
  %v391 = vld [vmem:[%s388 + $0x10] sm:$0xff]
  %v392 = vld [vmem:[%s388 + $0x18] sm:$0xff]
  %394 = vset.pattern.permute.xlu0 0
  %395 = vperm.xlu0 %394, %v389
  %v396 = vpop.permute.xlu0 %395
  %399 = vset.pattern.permute.xlu0 0
  %400 = vperm.xlu0 %399, %v390
  %v401 = vpop.permute.xlu0 %400
  %404 = vset.pattern.permute.xlu0 0
  %405 = vperm.xlu0 %404, %v391
  %v406 = vpop.permute.xlu0 %405
  %409 = vset.pattern.permute.xlu0 0
  %410 = vperm.xlu0 %409, %v392
  %v411 = vpop.permute.xlu0 %410
  %v414 = vsel %vm74, %v384, 0
  %v417 = vsel %vm74, %v385, 0
  %v420 = vsel %vm74, %v386, 0
  %v423 = vsel %vm74, %v387, 0
  %425 = vmatprep.subr.mxu0 0.0
  %426 = vmatpush1.msra.mxu0 0.0
  %427 = vmatprep.subr.mxu0 0.0
  %428 = vmatpush1.msra.mxu0 0.0
  %429 = vmatprep.subr.mxu0 0.0
  %430 = vmatpush1.msra.mxu0 0.0
  %431 = vmatprep.subr.mxu0 0.0
  %432 = vmatpush1.msra.mxu0 0.0
  %433 = vmatprep.subr.mxu0 0.0
  %434 = vmatpush1.msra.mxu0 0.0
  %435 = vmatprep.subr.mxu0 0.0
  %436 = vmatpush1.msra.mxu0 0.0
  %437 = vmatprep.subr.mxu0 0.0
  %438 = vmatpush1.msra.mxu0 0.0
  %439 = vmatprep.subr.mxu0 0.0
  %440 = vmatpush1.msra.mxu0 0.0
  %441 = vmatprep.subr.mxu0 0.0
  %442 = vmatpush1.msra.mxu0 0.0
  %443 = vmatprep.subr.mxu0 0.0
  %444 = vmatpush1.msra.mxu0 0.0
  %445 = vmatprep.subr.mxu0 0.0
  %446 = vmatpush1.msra.mxu0 0.0
  %447 = vmatprep.subr.mxu0 0.0
  %448 = vmatpush1.msra.mxu0 0.0
  %449 = vmatprep.subr.mxu0 %v382
  %450 = vmatpush1.msra.mxu0 %v381
  %451 = vmatprep.subr.mxu0 %v380
  %452 = vmatpush1.msra.mxu0 %v379
  %453 = vmatprep.subr.mxu0 %v378
  %454 = vmatpush1.msra.mxu0 %v377
  %455 = vmatprep.subr.mxu0 %v376
  %456 = vmatpush1.msra.mxu0 %v375
  %457 = vmatprep.subr.mxu0 0.0
  %458 = vmatpush2.msra.mxu0 0.0
  %459 = vmatprep.subr.mxu0 0.0
  %460 = vmatpush2.msra.mxu0 0.0
  %461 = vmatprep.subr.mxu0 0.0
  %462 = vmatpush2.msra.mxu0 0.0
  %463 = vmatprep.subr.mxu0 0.0
  %464 = vmatpush2.msra.mxu0 0.0
  %465 = vmatprep.subr.mxu0 0.0
  %466 = vmatpush2.msra.mxu0 0.0
  %467 = vmatprep.subr.mxu0 0.0
  %468 = vmatpush2.msra.mxu0 0.0
  %469 = vmatprep.subr.mxu0 0.0
  %470 = vmatpush2.msra.mxu0 0.0
  %471 = vmatprep.subr.mxu0 0.0
  %472 = vmatpush2.msra.mxu0 0.0
  %473 = vmatprep.subr.mxu0 0.0
  %474 = vmatpush2.msra.mxu0 0.0
  %475 = vmatprep.subr.mxu0 0.0
  %476 = vmatpush2.msra.mxu0 0.0
  %477 = vmatprep.subr.mxu0 0.0
  %478 = vmatpush2.msra.mxu0 0.0
  %479 = vmatprep.subr.mxu0 0.0
  %480 = vmatpush2.msra.mxu0 0.0
  %481 = vmatprep.subr.mxu0 0.0
  %482 = vmatpush2.msra.mxu0 0.0
  %483 = vmatprep.subr.mxu0 0.0
  %484 = vmatpush2.msra.mxu0 0.0
  %485 = vmatprep.subr.mxu0 0.0
  %486 = vmatpush2.msra.mxu0 0.0
  %487 = vmatprep.subr.mxu0 0.0
  %488 = vmatpush2.msra.mxu0 0.0
  %489 = vmatprep.mubr.f32.mxu0 0.0
  %490 = vmatmul.mubr.f32.gmra.mxu0 %v414
  %v491 = vpop.f32.mrf.mxu0
  %v492 = vadd.f32 %v396, %v491
  %v493 = vpop.f32.mrf.mxu0
  %v494 = vadd.f32 %v396, %v493
  %495 = vmatprep.mubr.f32.mxu0 0.0
  %496 = vmatmul.mubr.f32.gmra.mxu0 %v417
  %v497 = vpop.f32.mrf.mxu0
  %v498 = vadd.f32 %v401, %v497
  %v499 = vpop.f32.mrf.mxu0
  %v500 = vadd.f32 %v401, %v499
  %501 = vmatprep.mubr.f32.mxu0 0.0
  %502 = vmatmul.mubr.f32.gmra.mxu0 %v420
  %v503 = vpop.f32.mrf.mxu0
  %v504 = vadd.f32 %v406, %v503
  %v505 = vpop.f32.mrf.mxu0
  %v506 = vadd.f32 %v406, %v505
  %507 = vmatprep.mubr.f32.mxu0 0.0
  %508 = vmatmul.mubr.f32.gmra.mxu0 %v423
  %v509 = vpop.f32.mrf.mxu0
  %v510 = vadd.f32 %v411, %v509
  %v511 = vpop.f32.mrf.mxu0
  %v512 = vadd.f32 %v411, %v511
  %513 = vdwg.mxu0
  %v514 = vxor.u32 %v492, 2147483648
  %v515 = vxor.u32 %v494, 2147483648
  %v516 = vxor.u32 %v498, 2147483648
  %v517 = vxor.u32 %v500, 2147483648
  %v518 = vxor.u32 %v504, 2147483648
  %v519 = vxor.u32 %v506, 2147483648
  %v520 = vxor.u32 %v510, 2147483648
  %v521 = vxor.u32 %v512, 2147483648
  %v522 = vmul.f32 %v514, 1.442695
  %v523 = vpow.pop %v522
  %v524 = vmul.f32 %v515, 1.442695
  %v525 = vpow.pop %v524
  %v526 = vmul.f32 %v516, 1.442695
  %v527 = vpow.pop %v526
  %v528 = vmul.f32 %v517, 1.442695
  %v529 = vpow.pop %v528
  %v530 = vmul.f32 %v518, 1.442695
  %v531 = vpow.pop %v530
  %v532 = vmul.f32 %v519, 1.442695
  %v533 = vpow.pop %v532
  %v534 = vmul.f32 %v520, 1.442695
  %v535 = vpow.pop %v534
  %v536 = vmul.f32 %v521, 1.442695
  %v537 = vpow.pop %v536
  %v538 = vadd.f32 %v523, 1.0
  %v539 = vadd.f32 %v525, 1.0
  %v540 = vadd.f32 %v527, 1.0
  %v541 = vadd.f32 %v529, 1.0
  %v542 = vadd.f32 %v531, 1.0
  %v543 = vadd.f32 %v533, 1.0
  %v544 = vadd.f32 %v535, 1.0
  %v545 = vadd.f32 %v537, 1.0
  %v546 = vrcp.pop %v538
  %v547 = vmul.f32 1.0, %v546
  %v548 = vrcp.pop %v539
  %v549 = vmul.f32 1.0, %v548
  %v550 = vrcp.pop %v540
  %v551 = vmul.f32 1.0, %v550
  %v552 = vrcp.pop %v541
  %v553 = vmul.f32 1.0, %v552
  %v554 = vrcp.pop %v542
  %v555 = vmul.f32 1.0, %v554
  %v556 = vrcp.pop %v543
  %v557 = vmul.f32 1.0, %v556
  %v558 = vrcp.pop %v544
  %v559 = vmul.f32 1.0, %v558
  %v560 = vrcp.pop %v545
  %v561 = vmul.f32 1.0, %v560
  %v562 = vrot.slane %v547, 7
  %v563 = vrot.slane %v549, 7
  %v564 = vrot.slane %v551, 7
  %v565 = vrot.slane %v553, 7
  %v566 = vrot.slane %v555, 7
  %v567 = vrot.slane %v557, 7
  %v568 = vrot.slane %v559, 7
  %v569 = vrot.slane %v561, 7
  %v570 = vsel %vm330, %v566, %v568
  %v571 = vsel %vm330, %v567, %v569
  %v572 = vsel %vm330, %v564, %v566
  %v573 = vsel %vm330, %v565, %v567
  %v574 = vsel %vm330, %v562, %v564
  %v575 = vsel %vm330, %v563, %v565
  %v576 = vsel %vm330, %v568, %v562
  %v577 = vsel %vm330, %v569, %v563
  %v578 = vadd.f32 %v547, %v576
  %v579 = vadd.f32 %v549, %v577
  %v580 = vadd.f32 %v551, %v574
  %v581 = vadd.f32 %v553, %v575
  %v582 = vadd.f32 %v555, %v572
  %v583 = vadd.f32 %v557, %v573
  %v584 = vadd.f32 %v559, %v570
  %v585 = vadd.f32 %v561, %v571
  %v586 = vmul.f32 %v578, %v578
  %v587 = vmul.f32 %v579, %v579
  %v588 = vmul.f32 %v580, %v580
  %v589 = vmul.f32 %v581, %v581
  %v590 = vmul.f32 %v582, %v582
  %v591 = vmul.f32 %v583, %v583
  %v592 = vmul.f32 %v584, %v584
  %v593 = vmul.f32 %v585, %v585
  %v594 = vadd.f32 %v586, %v588
  %v595 = vadd.f32 %v594, %v590
  %v596 = vadd.f32 %v595, %v592
  %v597 = vrot.slane %v596, 4
  %v598 = vadd.f32 %v596, %v597
  %v599 = vrot.slane %v598, 2
  %v600 = vadd.f32 %v598, %v599
  %v601 = vrot.slane %v600, 1
  %v602 = vadd.f32 %v600, %v601
  %v603 = vadd.f32 %v587, %v589
  %v604 = vadd.f32 %v603, %v591
  %v605 = vadd.f32 %v604, %v593
  %v606 = vrot.slane %v605, 4
  %v607 = vadd.f32 %v605, %v606
  %v608 = vrot.slane %v607, 2
  %v609 = vadd.f32 %v607, %v608
  %v610 = vrot.slane %v609, 1
  %v611 = vadd.f32 %v609, %v610
  %v612 = vrsqrt.pop %v602
  %v613 = vrsqrt.pop %v611
  %v614 = vmul.f32 %v578, %v612
  %v615 = vmul.f32 %v579, %v613
  %v616 = vmul.f32 %v580, %v612
  %v617 = vmul.f32 %v581, %v613
  %v618 = vmul.f32 %v582, %v612
  %v619 = vmul.f32 %v583, %v613
  %v620 = vmul.f32 %v584, %v612
  %v621 = vmul.f32 %v585, %v613
  %s622 = scalar_lea.vmem %s1, 64
  %v623 = vld [vmem:[%s622] sm:$0xff]
  %v624 = vld [vmem:[%s622 + $0x8] sm:$0xff]
  %v625 = vld [vmem:[%s622 + $0x10] sm:$0xff]
  %v626 = vld [vmem:[%s622 + $0x18] sm:$0xff]
  %s627 = scalar_lea.vmem %s2, 64
  %v628 = vld [vmem:[%s627] sm:$0xff]
  %v629 = vld [vmem:[%s627 + $0x8] sm:$0xff]
  %v630 = vld [vmem:[%s627 + $0x10] sm:$0xff]
  %v631 = vld [vmem:[%s627 + $0x18] sm:$0xff]
  %633 = vset.pattern.permute.xlu0 0
  %634 = vperm.xlu0 %633, %v628
  %v635 = vpop.permute.xlu0 %634
  %638 = vset.pattern.permute.xlu0 0
  %639 = vperm.xlu0 %638, %v629
  %v640 = vpop.permute.xlu0 %639
  %643 = vset.pattern.permute.xlu0 0
  %644 = vperm.xlu0 %643, %v630
  %v645 = vpop.permute.xlu0 %644
  %648 = vset.pattern.permute.xlu0 0
  %649 = vperm.xlu0 %648, %v631
  %v650 = vpop.permute.xlu0 %649
  %v653 = vsel %vm74, %v623, 0
  %v656 = vsel %vm74, %v624, 0
  %v659 = vsel %vm74, %v625, 0
  %v662 = vsel %vm74, %v626, 0
  %664 = vmatprep.subr.mxu0 0.0
  %665 = vmatpush1.msra.mxu0 0.0
  %666 = vmatprep.subr.mxu0 0.0
  %667 = vmatpush1.msra.mxu0 0.0
  %668 = vmatprep.subr.mxu0 0.0
  %669 = vmatpush1.msra.mxu0 0.0
  %670 = vmatprep.subr.mxu0 0.0
  %671 = vmatpush1.msra.mxu0 0.0
  %672 = vmatprep.subr.mxu0 0.0
  %673 = vmatpush1.msra.mxu0 0.0
  %674 = vmatprep.subr.mxu0 0.0
  %675 = vmatpush1.msra.mxu0 0.0
  %676 = vmatprep.subr.mxu0 0.0
  %677 = vmatpush1.msra.mxu0 0.0
  %678 = vmatprep.subr.mxu0 0.0
  %679 = vmatpush1.msra.mxu0 0.0
  %680 = vmatprep.subr.mxu0 0.0
  %681 = vmatpush1.msra.mxu0 0.0
  %682 = vmatprep.subr.mxu0 0.0
  %683 = vmatpush1.msra.mxu0 0.0
  %684 = vmatprep.subr.mxu0 0.0
  %685 = vmatpush1.msra.mxu0 0.0
  %686 = vmatprep.subr.mxu0 0.0
  %687 = vmatpush1.msra.mxu0 0.0
  %688 = vmatprep.subr.mxu0 %v621
  %689 = vmatpush1.msra.mxu0 %v620
  %690 = vmatprep.subr.mxu0 %v619
  %691 = vmatpush1.msra.mxu0 %v618
  %692 = vmatprep.subr.mxu0 %v617
  %693 = vmatpush1.msra.mxu0 %v616
  %694 = vmatprep.subr.mxu0 %v615
  %695 = vmatpush1.msra.mxu0 %v614
  %696 = vmatprep.subr.mxu0 0.0
  %697 = vmatpush2.msra.mxu0 0.0
  %698 = vmatprep.subr.mxu0 0.0
  %699 = vmatpush2.msra.mxu0 0.0
  %700 = vmatprep.subr.mxu0 0.0
  %701 = vmatpush2.msra.mxu0 0.0
  %702 = vmatprep.subr.mxu0 0.0
  %703 = vmatpush2.msra.mxu0 0.0
  %704 = vmatprep.subr.mxu0 0.0
  %705 = vmatpush2.msra.mxu0 0.0
  %706 = vmatprep.subr.mxu0 0.0
  %707 = vmatpush2.msra.mxu0 0.0
  %708 = vmatprep.subr.mxu0 0.0
  %709 = vmatpush2.msra.mxu0 0.0
  %710 = vmatprep.subr.mxu0 0.0
  %711 = vmatpush2.msra.mxu0 0.0
  %712 = vmatprep.subr.mxu0 0.0
  %713 = vmatpush2.msra.mxu0 0.0
  %714 = vmatprep.subr.mxu0 0.0
  %715 = vmatpush2.msra.mxu0 0.0
  %716 = vmatprep.subr.mxu0 0.0
  %717 = vmatpush2.msra.mxu0 0.0
  %718 = vmatprep.subr.mxu0 0.0
  %719 = vmatpush2.msra.mxu0 0.0
  %720 = vmatprep.subr.mxu0 0.0
  %721 = vmatpush2.msra.mxu0 0.0
  %722 = vmatprep.subr.mxu0 0.0
  %723 = vmatpush2.msra.mxu0 0.0
  %724 = vmatprep.subr.mxu0 0.0
  %725 = vmatpush2.msra.mxu0 0.0
  %726 = vmatprep.subr.mxu0 0.0
  %727 = vmatpush2.msra.mxu0 0.0
  %728 = vmatprep.mubr.f32.mxu0 0.0
  %729 = vmatmul.mubr.f32.gmra.mxu0 %v653
  %v730 = vpop.f32.mrf.mxu0
  %v731 = vadd.f32 %v635, %v730
  %v732 = vpop.f32.mrf.mxu0
  %v733 = vadd.f32 %v635, %v732
  %734 = vmatprep.mubr.f32.mxu0 0.0
  %735 = vmatmul.mubr.f32.gmra.mxu0 %v656
  %v736 = vpop.f32.mrf.mxu0
  %v737 = vadd.f32 %v640, %v736
  %v738 = vpop.f32.mrf.mxu0
  %v739 = vadd.f32 %v640, %v738
  %740 = vmatprep.mubr.f32.mxu0 0.0
  %741 = vmatmul.mubr.f32.gmra.mxu0 %v659
  %v742 = vpop.f32.mrf.mxu0
  %v743 = vadd.f32 %v645, %v742
  %v744 = vpop.f32.mrf.mxu0
  %v745 = vadd.f32 %v645, %v744
  %746 = vmatprep.mubr.f32.mxu0 0.0
  %747 = vmatmul.mubr.f32.gmra.mxu0 %v662
  %v748 = vpop.f32.mrf.mxu0
  %v749 = vadd.f32 %v650, %v748
  %v750 = vpop.f32.mrf.mxu0
  %v751 = vadd.f32 %v650, %v750
  %752 = vdwg.mxu0
  %v753 = vxor.u32 %v731, 2147483648
  %v754 = vxor.u32 %v733, 2147483648
  %v755 = vxor.u32 %v737, 2147483648
  %v756 = vxor.u32 %v739, 2147483648
  %v757 = vxor.u32 %v743, 2147483648
  %v758 = vxor.u32 %v745, 2147483648
  %v759 = vxor.u32 %v749, 2147483648
  %v760 = vxor.u32 %v751, 2147483648
  %v761 = vmul.f32 %v753, 1.442695
  %v762 = vpow.pop %v761
  %v763 = vmul.f32 %v754, 1.442695
  %v764 = vpow.pop %v763
  %v765 = vmul.f32 %v755, 1.442695
  %v766 = vpow.pop %v765
  %v767 = vmul.f32 %v756, 1.442695
  %v768 = vpow.pop %v767
  %v769 = vmul.f32 %v757, 1.442695
  %v770 = vpow.pop %v769
  %v771 = vmul.f32 %v758, 1.442695
  %v772 = vpow.pop %v771
  %v773 = vmul.f32 %v759, 1.442695
  %v774 = vpow.pop %v773
  %v775 = vmul.f32 %v760, 1.442695
  %v776 = vpow.pop %v775
  %v777 = vadd.f32 %v762, 1.0
  %v778 = vadd.f32 %v764, 1.0
  %v779 = vadd.f32 %v766, 1.0
  %v780 = vadd.f32 %v768, 1.0
  %v781 = vadd.f32 %v770, 1.0
  %v782 = vadd.f32 %v772, 1.0
  %v783 = vadd.f32 %v774, 1.0
  %v784 = vadd.f32 %v776, 1.0
  %v785 = vrcp.pop %v777
  %v786 = vmul.f32 1.0, %v785
  %v787 = vrcp.pop %v778
  %v788 = vmul.f32 1.0, %v787
  %v789 = vrcp.pop %v779
  %v790 = vmul.f32 1.0, %v789
  %v791 = vrcp.pop %v780
  %v792 = vmul.f32 1.0, %v791
  %v793 = vrcp.pop %v781
  %v794 = vmul.f32 1.0, %v793
  %v795 = vrcp.pop %v782
  %v796 = vmul.f32 1.0, %v795
  %v797 = vrcp.pop %v783
  %v798 = vmul.f32 1.0, %v797
  %v799 = vrcp.pop %v784
  %v800 = vmul.f32 1.0, %v799
  %v801 = vrot.slane %v786, 7
  %v802 = vrot.slane %v788, 7
  %v803 = vrot.slane %v790, 7
  %v804 = vrot.slane %v792, 7
  %v805 = vrot.slane %v794, 7
  %v806 = vrot.slane %v796, 7
  %v807 = vrot.slane %v798, 7
  %v808 = vrot.slane %v800, 7
  %v809 = vsel %vm330, %v805, %v807
  %v810 = vsel %vm330, %v806, %v808
  %v811 = vsel %vm330, %v803, %v805
  %v812 = vsel %vm330, %v804, %v806
  %v813 = vsel %vm330, %v801, %v803
  %v814 = vsel %vm330, %v802, %v804
  %v815 = vsel %vm330, %v807, %v801
  %v816 = vsel %vm330, %v808, %v802
  %v817 = vadd.f32 %v786, %v815
  %v818 = vadd.f32 %v788, %v816
  %v819 = vadd.f32 %v790, %v813
  %v820 = vadd.f32 %v792, %v814
  %v821 = vadd.f32 %v794, %v811
  %v822 = vadd.f32 %v796, %v812
  %v823 = vadd.f32 %v798, %v809
  %v824 = vadd.f32 %v800, %v810
  %v825 = vmul.f32 %v817, %v817
  %v826 = vmul.f32 %v818, %v818
  %v827 = vmul.f32 %v819, %v819
  %v828 = vmul.f32 %v820, %v820
  %v829 = vmul.f32 %v821, %v821
  %v830 = vmul.f32 %v822, %v822
  %v831 = vmul.f32 %v823, %v823
  %v832 = vmul.f32 %v824, %v824
  %v833 = vadd.f32 %v825, %v827
  %v834 = vadd.f32 %v833, %v829
  %v835 = vadd.f32 %v834, %v831
  %v836 = vrot.slane %v835, 4
  %v837 = vadd.f32 %v835, %v836
  %v838 = vrot.slane %v837, 2
  %v839 = vadd.f32 %v837, %v838
  %v840 = vrot.slane %v839, 1
  %v841 = vadd.f32 %v839, %v840
  %v842 = vadd.f32 %v826, %v828
  %v843 = vadd.f32 %v842, %v830
  %v844 = vadd.f32 %v843, %v832
  %v845 = vrot.slane %v844, 4
  %v846 = vadd.f32 %v844, %v845
  %v847 = vrot.slane %v846, 2
  %v848 = vadd.f32 %v846, %v847
  %v849 = vrot.slane %v848, 1
  %v850 = vadd.f32 %v848, %v849
  %v851 = vrsqrt.pop %v841
  %v852 = vrsqrt.pop %v850
  %v853 = vmul.f32 %v817, %v851
  %v854 = vmul.f32 %v818, %v852
  %v855 = vmul.f32 %v819, %v851
  %v856 = vmul.f32 %v820, %v852
  %v857 = vmul.f32 %v821, %v851
  %v858 = vmul.f32 %v822, %v852
  %v859 = vmul.f32 %v823, %v851
  %v860 = vmul.f32 %v824, %v852
  %861 = vst [vmem:[%s3] sm:$0xff] %v853
  %862 = vst [vmem:[%s3 + $0x8] sm:$0xff] %v854
  %863 = vst [vmem:[%s3 + $0x10] sm:$0xff] %v855
  %864 = vst [vmem:[%s3 + $0x18] sm:$0xff] %v856
  %865 = vst [vmem:[%s3 + $0x20] sm:$0xff] %v857
  %866 = vst [vmem:[%s3 + $0x28] sm:$0xff] %v858
  %867 = vst [vmem:[%s3 + $0x30] sm:$0xff] %v859
  %868 = vst [vmem:[%s3 + $0x38] sm:$0xff] %v860
  // Predicated region
  $region14: #{quantum_circuit_forward.1} parent=0 // pred_check
    _
  $region15: #{quantum_circuit_forward.1} parent=0 // pred_check_branch
    %870 = sbr.rel (0) target = $region17
  $region16: #{quantum_circuit_forward.1} parent=0 // pred_region
    _
  $region17: #{quantum_circuit_forward.1} parent=0 // pred_fallthru
    _
  // Predicated region
  $region18: #{quantum_circuit_forward.1} parent=0 // pred_check
    _
  $region19: #{quantum_circuit_forward.1} parent=0 // pred_check_branch
    %872 = sbr.rel (0) target = $region21
  $region20: #{quantum_circuit_forward.1} parent=0 // pred_region
    _
  $region21: #{quantum_circuit_forward.1} parent=0 // pred_fallthru
    _

</llo_original>
